<compile_context>
chip_gen: v7x
topology: tpu7x:2x2x1
jax: 0.10.0
libtpu: 0.0.40
codegen_flags: <defaults>
</compile_context>

<pallas_src>
import jax
import jax.numpy as jnp
from jax.experimental import pallas as pl
from jax.experimental.pallas import tpu as pltpu

EMB_DIM = 256
SUB = 512                          # in-kernel sub-block rows (mult. of 8/128)
MAX_TILE = 2048                    # max rows per grid step
MIN_PALLAS_ROWS = 1024             # below this, plain table[x] wins
VMEM_BUDGET_BYTES = 24 * 1024 * 1024  # stay under the 32 MiB scoped default


def _round_up(a, b):
    return ((a + b - 1) // b) * b


def _embed_kernel(idx_ref, table_ref, out_ref):
    # idx_ref:   (tile, 1)  int32   indices for this tile (input blocks full)
    # table_ref: (nc, d)    full table, VMEM-resident (constant block index)
    # out_ref:   (tile, d)  output tile; final grid block may be partial —
    #                       Pallas clips the writeback, so rows past n are
    #                       computed (from padded indices) but never stored.
    nc = table_ref.shape[0]
    tile = out_ref.shape[0]
    table = table_ref[...]
    # Hoisted once per tile (JAX does not CSE broadcast_in_dim).
    col_ids = jax.lax.broadcasted_iota(jnp.int32, (SUB, nc), 1)

    # Static sub-block loop (tile is a compile-time constant, tile % SUB == 0):
    # keeps the (SUB, nc) one-hot and the (SUB, d) f32 MXU result small so the
    # big-tile DMA amortization doesn't push the kernel into spill territory.
    for s in range(tile // SUB):
        start = s * SUB
        idx = idx_ref[pl.ds(start, SUB), :]                  # (SUB, 1)
        one_hot = (idx == col_ids).astype(table.dtype)       # (SUB, nc)
        out_ref[pl.ds(start, SUB), :] = jnp.dot(
            one_hot, table, preferred_element_type=jnp.float32
        ).astype(out_ref.dtype)


def cam_embedding_forward(x, table, *, out_dtype=None,
                          min_pallas_rows=MIN_PALLAS_ROWS):
    """Equivalent of nn.Embedding(nc, 256)(x).

    x:         integer array of arbitrary shape
    table:     (nc, EMB_DIM) embedding weights
    out_dtype: optional output dtype (e.g. jnp.bfloat16 to halve writeback
               bytes when downstream consumes bf16); defaults to table.dtype.
    """
    orig_shape = x.shape
    nc, d = table.shape
    out_dtype = table.dtype if out_dtype is None else out_dtype
    idx = x.reshape(-1).astype(jnp.int32)
    n = idx.shape[0]

    if n < min_pallas_rows:
        # Tiny lookup: pallas_call launch overhead dominates; use XLA gather.
        return table[idx].astype(out_dtype).reshape(orig_shape + (d,))

    # Adaptive tile: largest multiple of SUB up to MAX_TILE that doesn't
    # over-pad small n.
    tile = min(MAX_TILE, _round_up(n, SUB))

    out_sz = jnp.dtype(out_dtype).itemsize
    tab_sz = jnp.dtype(table.dtype).itemsize
    # VMEM guard: the resident-table + (SUB, nc) one-hot design assumes a
    # small camera-id vocabulary; degrade gracefully for large nc.
    vmem_est = (2 * nc * d * tab_sz          # table (double-buffered)
                + 2 * tile * d * out_sz      # output tiles (double-buffered)
                + 2 * tile * 4               # index tiles
                + 3 * SUB * nc * 4           # one-hot / iota temporaries
                + SUB * d * 4)               # f32 matmul result staging
    if vmem_est > VMEM_BUDGET_BYTES:
        # TODO(synk): nc-tiled (accumulate-over-table-chunks) kernel for large nc.
        return table[idx].astype(out_dtype).reshape(orig_shape + (d,))

    n_tiles = pl.cdiv(n, tile)
    n_pad = n_tiles * tile
    # Pad only the index vector (pad value 0 is a valid row; those rows fall
    # in the clipped region of the final partial output block and are never
    # written back).  The output itself stays exact-sized.
    idx2d = jnp.pad(idx, (0, n_pad - n)).reshape(n_pad, 1)

    grid_spec = pltpu.PrefetchScalarGridSpec(
        num_scalar_prefetch=0,
        grid=(n_tiles,),
        in_specs=[
            # Per-tile index column (always a full block thanks to padding).
            pl.BlockSpec((tile, 1), lambda i: (i, 0)),
            # Full table, resident in VMEM (constant block index -> one DMA).
            pl.BlockSpec((nc, d), lambda i: (0, 0)),
        ],
        out_specs=pl.BlockSpec((tile, d), lambda i: (i, 0)),
    )

    out = pl.pallas_call(
        _embed_kernel,
        out_shape=jax.ShapeDtypeStruct((n, d), out_dtype),
        grid_spec=grid_spec,
        compiler_params=pltpu.CompilerParams(
            dimension_semantics=("parallel",),
        ),
        cost_estimate=pl.CostEstimate(
            flops=2 * n_pad * nc * d,
            transcendentals=0,
            bytes_accessed=n * d * out_sz + n_pad * 4 + nc * d * tab_sz,
        ),
    )(idx2d, table)

    return out.reshape(orig_shape + (d,))


if __name__ == "__main__":
    key = jax.random.PRNGKey(0)
    k_tab, k1, k2, k3 = jax.random.split(key, 4)

    nc = 16  # number of camera ids

    # nn.Embedding default init is N(0, 1); reproduce deterministically.
    table = jax.random.normal(k_tab, (nc, EMB_DIM), dtype=jnp.float32)

    # --- Case 1: tiny index tensor (B=2, S=8) -> fast-path (XLA gather). ---
    x_small = jax.random.randint(k1, (2, 8), 0, nc, dtype=jnp.int32)
    out_small = jax.block_until_ready(cam_embedding_forward(x_small, table))
    ref_small = table[x_small]
    assert out_small.shape == (2, 8, EMB_DIM)
    assert jnp.allclose(out_small, ref_small), "small-case mismatch"

    # --- Case 2: same tiny tensor forced through the Pallas kernel
    #             (single, fully partial output block + padded index tile). ---
    out_small_pl = jax.block_until_ready(
        cam_embedding_forward(x_small, table, min_pallas_rows=0)
    )
    assert jnp.allclose(out_small_pl, ref_small), "forced-Pallas small mismatch"

    # --- Case 3: n = 2100 (non-multiple of the 2048 tile) -> 2 grid steps,
    #             final output block partial (writeback clipped to 52 rows). ---
    x_big = jax.random.randint(k2, (3, 700), 0, nc, dtype=jnp.int32)
    out_big = jax.block_until_ready(cam_embedding_forward(x_big, table))
    ref_big = table[x_big]
    assert out_big.shape == (3, 700, EMB_DIM)
    assert jnp.allclose(out_big, ref_big), "Pallas embedding mismatch vs reference"

    # --- Case 4: n = 4096 (exact multiple of MAX_TILE) -> all full blocks. ---
    x_even = jax.random.randint(k3, (4, 1024), 0, nc, dtype=jnp.int32)
    out_even = jax.block_until_ready(cam_embedding_forward(x_even, table))
    assert out_even.shape == (4, 1024, EMB_DIM)
    assert jnp.allclose(out_even, table[x_even]), "full-block mismatch"

    print("KERNEL_OK")
</pallas_src>

<mosaic_0001>
module attributes {stable_mosaic.version = 11 : i64} {
  func.func @_embed_kernel(%arg0: i32, %arg1: memref<512x1xi32, #tpu.memory_space<vmem>>, %arg2: memref<16x256xf32, #tpu.memory_space<vmem>>, %arg3: memref<512x256xf32, #tpu.memory_space<vmem>>) attributes {dimension_semantics = [#tpu.dimension_semantics<parallel>], iteration_bounds = array<i64: 1>, scalar_prefetch = 0 : i64, scratch_operands = 0 : i64, tpu.core_type = #tpu.core_type<tc>, window_params = [{transform_indices = @transform_0, window_bounds = array<i64: 512, 1>}, {pipeline_mode = #tpu.pipeline_mode<synchronous>, transform_indices = @transform_1, window_bounds = array<i64: 16, 256>}, {transform_indices = @transform_2, window_bounds = array<i64: 512, 256>}]} {
    %c0 = arith.constant 0 : index
    %c0_0 = arith.constant 0 : index
    %0 = vector.load %arg2[%c0, %c0_0] : memref<16x256xf32, #tpu.memory_space<vmem>>, vector<16x256xf32>
    %1 = tpu.iota {dimensions = array<i32: 1>} : vector<512x16xi32>
    %c0_1 = arith.constant 0 : index
    %c0_2 = arith.constant 0 : index
    %2 = vector.load %arg1[%c0_1, %c0_2] : memref<512x1xi32, #tpu.memory_space<vmem>>, vector<512x1xi32>
    %3 = vector.broadcast %2 : vector<512x1xi32> to vector<512x16xi32>
    %4 = arith.cmpi eq, %3, %1 : vector<512x16xi32>
    %5 = arith.extui %4 : vector<512x16xi1> to vector<512x16xi32>
    %6 = arith.sitofp %5 : vector<512x16xi32> to vector<512x16xf32>
    %cst = arith.constant dense<0.000000e+00> : vector<512x256xf32>
    %7 = tpu.matmul %6, %0, %cst {dimension_numbers = #tpu.dot_dimension_numbers<[1], [0], [0], [1], [0, 0, 1, 1], [], []>} : vector<512x16xf32>, vector<16x256xf32>, vector<512x256xf32> -> vector<512x256xf32>
    %c0_3 = arith.constant 0 : index
    %c0_4 = arith.constant 0 : index
    %8 = vector.load %arg3[%c0_3, %c0_4] : memref<512x256xf32, #tpu.memory_space<vmem>>, vector<512x256xf32>
    tpu.vector_store %arg3[%c0_3, %c0_4], %7 {strides = array<i32>} : memref<512x256xf32, #tpu.memory_space<vmem>>, vector<512x256xf32>,
    return
  }
  func.func @transform_0(%arg0: i32) -> (i32, i32) {
    %c0_i32 = arith.constant 0 : i32
    %c0_i32_0 = arith.constant 0 : i32
    return %arg0, %c0_i32 : i32, i32
  }
  func.func @transform_1(%arg0: i32) -> (i32, i32) {
    %c0_i32 = arith.constant 0 : i32
    %c0_i32_0 = arith.constant 0 : i32
    %c0_i32_1 = arith.constant 0 : i32
    return %c0_i32, %c0_i32_0 : i32, i32
  }
  func.func @transform_2(%arg0: i32) -> (i32, i32) {
    %c0_i32 = arith.constant 0 : i32
    %c0_i32_0 = arith.constant 0 : i32
    return %arg0, %c0_i32 : i32, i32
  }
}

</mosaic_0001>

<llo_original>
// kernel: tpu_custom_call.1
$region0: #{tpu_custom_call.1}
  #allocation0 [shape = 'u32[]', space=smem, size = 0x4, offset = 0x4, fixed_abs, tag = 'smem constant byte address 0x4 - core index']
  #allocation1 [shape = 'u32[144,128]{1,0:T(1,128)}', space=vmem, size = 0x12000, scoped, tag = 'internal scratch']
  %s0 = inlined_call_operand.vmem [shape: s32[512,1], index: 0, kind: input, shape index: {}]
  %s1 = inlined_call_operand.vmem [shape: f32[16,256], index: 1, kind: input, shape index: {}]
  %s2 = inlined_call_operand.hbm [shape: f32[16,256], index: 2, kind: output, shape index: {}]
  %s3 = sld [smem:[#allocation0]]
  $region18: #{tpu_custom_call.1} parent=0
    _
  %s5 = ssub.s32 1, %s3
  %s6 = scalar_select 0, %s5, %s3
  $region1: #{tpu_custom_call.1} parent=0
    #allocation2 [shape = 'u8[524288]{0}', space=vmem, size = 0x80000, scoped, tag = 'output window, operand 0, single buffered']
    #allocation3 [shape = 's32[1]{0}', space=sflag, size = 0x4, scoped, tag = 'scoped memory for tpu_custom_call.1']
    %7 = vsyncpa [#allocation3], 0
    // Predicated region
    $region2: #{tpu_custom_call.1} parent=1 // pred_check
      _
    $region3: #{tpu_custom_call.1} parent=1 // pred_check_branch
      %9 = sbr.rel (0) target = $region5
    $region4: #{tpu_custom_call.1} parent=1 // pred_region
      _
    $region5: #{tpu_custom_call.1} parent=1 // pred_fallthru
      _
    // Predicated region
    $region6: #{tpu_custom_call.1} parent=1 // pred_check
      _
    $region7: #{tpu_custom_call.1} parent=1 // pred_check_branch
      %11 = sbr.rel (0) target = $region9
    $region8: #{tpu_custom_call.1} parent=1 // pred_region
      _
    $region9: #{tpu_custom_call.1} parent=1 // pred_fallthru
      _
    %v12 = vld [vmem:[%s1] sm:$0xff]
    %v13 = vld [vmem:[%s1 + $0x8] sm:$0xff]
    %v14 = vld [vmem:[%s1 + $0x10] sm:$0xff]
    %v15 = vld [vmem:[%s1 + $0x18] sm:$0xff]
    %v16 = vlaneseq
    %v17 = vand.u32 %v16, 127
    %v18 = vld [vmem:[%s0] sm:$0xff]
    %v19 = vld [vmem:[%s0 + $0x8] sm:$0xff]
    %v20 = vld [vmem:[%s0 + $0x10] sm:$0xff]
    %v21 = vld [vmem:[%s0 + $0x18] sm:$0xff]
    %v22 = vld [vmem:[%s0 + $0x20] sm:$0xff]
    %v23 = vld [vmem:[%s0 + $0x28] sm:$0xff]
    %v24 = vld [vmem:[%s0 + $0x30] sm:$0xff]
    %v25 = vld [vmem:[%s0 + $0x38] sm:$0xff]
    %v26 = vld [vmem:[%s0 + $0x40] sm:$0xff]
    %v27 = vld [vmem:[%s0 + $0x48] sm:$0xff]
    %v28 = vld [vmem:[%s0 + $0x50] sm:$0xff]
    %v29 = vld [vmem:[%s0 + $0x58] sm:$0xff]
    %v30 = vld [vmem:[%s0 + $0x60] sm:$0xff]
    %v31 = vld [vmem:[%s0 + $0x68] sm:$0xff]
    %v32 = vld [vmem:[%s0 + $0x70] sm:$0xff]
    %v33 = vld [vmem:[%s0 + $0x78] sm:$0xff]
    %v34 = vld [vmem:[%s0 + $0x80] sm:$0xff]
    %v35 = vld [vmem:[%s0 + $0x88] sm:$0xff]
    %v36 = vld [vmem:[%s0 + $0x90] sm:$0xff]
    %v37 = vld [vmem:[%s0 + $0x98] sm:$0xff]
    %v38 = vld [vmem:[%s0 + $0xa0] sm:$0xff]
    %v39 = vld [vmem:[%s0 + $0xa8] sm:$0xff]
    %v40 = vld [vmem:[%s0 + $0xb0] sm:$0xff]
    %v41 = vld [vmem:[%s0 + $0xb8] sm:$0xff]
    %v42 = vld [vmem:[%s0 + $0xc0] sm:$0xff]
    %v43 = vld [vmem:[%s0 + $0xc8] sm:$0xff]
    %v44 = vld [vmem:[%s0 + $0xd0] sm:$0xff]
    %v45 = vld [vmem:[%s0 + $0xd8] sm:$0xff]
    %v46 = vld [vmem:[%s0 + $0xe0] sm:$0xff]
    %v47 = vld [vmem:[%s0 + $0xe8] sm:$0xff]
    %v48 = vld [vmem:[%s0 + $0xf0] sm:$0xff]
    %v49 = vld [vmem:[%s0 + $0xf8] sm:$0xff]
    %v50 = vld [vmem:[%s0 + $0x100] sm:$0xff]
    %v51 = vld [vmem:[%s0 + $0x108] sm:$0xff]
    %v52 = vld [vmem:[%s0 + $0x110] sm:$0xff]
    %v53 = vld [vmem:[%s0 + $0x118] sm:$0xff]
    %v54 = vld [vmem:[%s0 + $0x120] sm:$0xff]
    %v55 = vld [vmem:[%s0 + $0x128] sm:$0xff]
    %v56 = vld [vmem:[%s0 + $0x130] sm:$0xff]
    %v57 = vld [vmem:[%s0 + $0x138] sm:$0xff]
    %v58 = vld [vmem:[%s0 + $0x140] sm:$0xff]
    %v59 = vld [vmem:[%s0 + $0x148] sm:$0xff]
    %v60 = vld [vmem:[%s0 + $0x150] sm:$0xff]
    %v61 = vld [vmem:[%s0 + $0x158] sm:$0xff]
    %v62 = vld [vmem:[%s0 + $0x160] sm:$0xff]
    %v63 = vld [vmem:[%s0 + $0x168] sm:$0xff]
    %v64 = vld [vmem:[%s0 + $0x170] sm:$0xff]
    %v65 = vld [vmem:[%s0 + $0x178] sm:$0xff]
    %v66 = vld [vmem:[%s0 + $0x180] sm:$0xff]
    %v67 = vld [vmem:[%s0 + $0x188] sm:$0xff]
    %v68 = vld [vmem:[%s0 + $0x190] sm:$0xff]
    %v69 = vld [vmem:[%s0 + $0x198] sm:$0xff]
    %v70 = vld [vmem:[%s0 + $0x1a0] sm:$0xff]
    %v71 = vld [vmem:[%s0 + $0x1a8] sm:$0xff]
    %v72 = vld [vmem:[%s0 + $0x1b0] sm:$0xff]
    %v73 = vld [vmem:[%s0 + $0x1b8] sm:$0xff]
    %v74 = vld [vmem:[%s0 + $0x1c0] sm:$0xff]
    %v75 = vld [vmem:[%s0 + $0x1c8] sm:$0xff]
    %v76 = vld [vmem:[%s0 + $0x1d0] sm:$0xff]
    %v77 = vld [vmem:[%s0 + $0x1d8] sm:$0xff]
    %v78 = vld [vmem:[%s0 + $0x1e0] sm:$0xff]
    %v79 = vld [vmem:[%s0 + $0x1e8] sm:$0xff]
    %v80 = vld [vmem:[%s0 + $0x1f0] sm:$0xff]
    %v81 = vld [vmem:[%s0 + $0x1f8] sm:$0xff]
    %82 = vset.pattern.permute.xlu0 0
    %83 = vperm.xlu0 %82, %v18
    %v84 = vpop.permute.xlu0 %83
    %85 = vset.pattern.permute.xlu0 0
    %86 = vperm.xlu0 %85, %v19
    %v87 = vpop.permute.xlu0 %86
    %88 = vset.pattern.permute.xlu0 0
    %89 = vperm.xlu0 %88, %v20
    %v90 = vpop.permute.xlu0 %89
    %91 = vset.pattern.permute.xlu0 0
    %92 = vperm.xlu0 %91, %v21
    %v93 = vpop.permute.xlu0 %92
    %94 = vset.pattern.permute.xlu0 0
    %95 = vperm.xlu0 %94, %v22
    %v96 = vpop.permute.xlu0 %95
    %97 = vset.pattern.permute.xlu0 0
    %98 = vperm.xlu0 %97, %v23
    %v99 = vpop.permute.xlu0 %98
    %100 = vset.pattern.permute.xlu0 0
    %101 = vperm.xlu0 %100, %v24
    %v102 = vpop.permute.xlu0 %101
    %103 = vset.pattern.permute.xlu0 0
    %104 = vperm.xlu0 %103, %v25
    %v105 = vpop.permute.xlu0 %104
    %106 = vset.pattern.permute.xlu0 0
    %107 = vperm.xlu0 %106, %v26
    %v108 = vpop.permute.xlu0 %107
    %109 = vset.pattern.permute.xlu0 0
    %110 = vperm.xlu0 %109, %v27
    %v111 = vpop.permute.xlu0 %110
    %112 = vset.pattern.permute.xlu0 0
    %113 = vperm.xlu0 %112, %v28
    %v114 = vpop.permute.xlu0 %113
    %115 = vset.pattern.permute.xlu0 0
    %116 = vperm.xlu0 %115, %v29
    %v117 = vpop.permute.xlu0 %116
    %118 = vset.pattern.permute.xlu0 0
    %119 = vperm.xlu0 %118, %v30
    %v120 = vpop.permute.xlu0 %119
    %121 = vset.pattern.permute.xlu0 0
    %122 = vperm.xlu0 %121, %v31
    %v123 = vpop.permute.xlu0 %122
    %124 = vset.pattern.permute.xlu0 0
    %125 = vperm.xlu0 %124, %v32
    %v126 = vpop.permute.xlu0 %125
    %127 = vset.pattern.permute.xlu0 0
    %128 = vperm.xlu0 %127, %v33
    %v129 = vpop.permute.xlu0 %128
    %130 = vset.pattern.permute.xlu0 0
    %131 = vperm.xlu0 %130, %v34
    %v132 = vpop.permute.xlu0 %131
    %133 = vset.pattern.permute.xlu0 0
    %134 = vperm.xlu0 %133, %v35
    %v135 = vpop.permute.xlu0 %134
    %136 = vset.pattern.permute.xlu0 0
    %137 = vperm.xlu0 %136, %v36
    %v138 = vpop.permute.xlu0 %137
    %139 = vset.pattern.permute.xlu0 0
    %140 = vperm.xlu0 %139, %v37
    %v141 = vpop.permute.xlu0 %140
    %142 = vset.pattern.permute.xlu0 0
    %143 = vperm.xlu0 %142, %v38
    %v144 = vpop.permute.xlu0 %143
    %145 = vset.pattern.permute.xlu0 0
    %146 = vperm.xlu0 %145, %v39
    %v147 = vpop.permute.xlu0 %146
    %148 = vset.pattern.permute.xlu0 0
    %149 = vperm.xlu0 %148, %v40
    %v150 = vpop.permute.xlu0 %149
    %151 = vset.pattern.permute.xlu0 0
    %152 = vperm.xlu0 %151, %v41
    %v153 = vpop.permute.xlu0 %152
    %154 = vset.pattern.permute.xlu0 0
    %155 = vperm.xlu0 %154, %v42
    %v156 = vpop.permute.xlu0 %155
    %157 = vset.pattern.permute.xlu0 0
    %158 = vperm.xlu0 %157, %v43
    %v159 = vpop.permute.xlu0 %158
    %160 = vset.pattern.permute.xlu0 0
    %161 = vperm.xlu0 %160, %v44
    %v162 = vpop.permute.xlu0 %161
    %163 = vset.pattern.permute.xlu0 0
    %164 = vperm.xlu0 %163, %v45
    %v165 = vpop.permute.xlu0 %164
    %166 = vset.pattern.permute.xlu0 0
    %167 = vperm.xlu0 %166, %v46
    %v168 = vpop.permute.xlu0 %167
    %169 = vset.pattern.permute.xlu0 0
    %170 = vperm.xlu0 %169, %v47
    %v171 = vpop.permute.xlu0 %170
    %172 = vset.pattern.permute.xlu0 0
    %173 = vperm.xlu0 %172, %v48
    %v174 = vpop.permute.xlu0 %173
    %175 = vset.pattern.permute.xlu0 0
    %176 = vperm.xlu0 %175, %v49
    %v177 = vpop.permute.xlu0 %176
    %178 = vset.pattern.permute.xlu0 0
    %179 = vperm.xlu0 %178, %v50
    %v180 = vpop.permute.xlu0 %179
    %181 = vset.pattern.permute.xlu0 0
    %182 = vperm.xlu0 %181, %v51
    %v183 = vpop.permute.xlu0 %182
    %184 = vset.pattern.permute.xlu0 0
    %185 = vperm.xlu0 %184, %v52
    %v186 = vpop.permute.xlu0 %185
    %187 = vset.pattern.permute.xlu0 0
    %188 = vperm.xlu0 %187, %v53
    %v189 = vpop.permute.xlu0 %188
    %190 = vset.pattern.permute.xlu0 0
    %191 = vperm.xlu0 %190, %v54
    %v192 = vpop.permute.xlu0 %191
    %193 = vset.pattern.permute.xlu0 0
    %194 = vperm.xlu0 %193, %v55
    %v195 = vpop.permute.xlu0 %194
    %196 = vset.pattern.permute.xlu0 0
    %197 = vperm.xlu0 %196, %v56
    %v198 = vpop.permute.xlu0 %197
    %199 = vset.pattern.permute.xlu0 0
    %200 = vperm.xlu0 %199, %v57
    %v201 = vpop.permute.xlu0 %200
    %202 = vset.pattern.permute.xlu0 0
    %203 = vperm.xlu0 %202, %v58
    %v204 = vpop.permute.xlu0 %203
    %205 = vset.pattern.permute.xlu0 0
    %206 = vperm.xlu0 %205, %v59
    %v207 = vpop.permute.xlu0 %206
    %208 = vset.pattern.permute.xlu0 0
    %209 = vperm.xlu0 %208, %v60
    %v210 = vpop.permute.xlu0 %209
    %211 = vset.pattern.permute.xlu0 0
    %212 = vperm.xlu0 %211, %v61
    %v213 = vpop.permute.xlu0 %212
    %214 = vset.pattern.permute.xlu0 0
    %215 = vperm.xlu0 %214, %v62
    %v216 = vpop.permute.xlu0 %215
    %217 = vset.pattern.permute.xlu0 0
    %218 = vperm.xlu0 %217, %v63
    %v219 = vpop.permute.xlu0 %218
    %220 = vset.pattern.permute.xlu0 0
    %221 = vperm.xlu0 %220, %v64
    %v222 = vpop.permute.xlu0 %221
    %223 = vset.pattern.permute.xlu0 0
    %224 = vperm.xlu0 %223, %v65
    %v225 = vpop.permute.xlu0 %224
    %226 = vset.pattern.permute.xlu0 0
    %227 = vperm.xlu0 %226, %v66
    %v228 = vpop.permute.xlu0 %227
    %229 = vset.pattern.permute.xlu0 0
    %230 = vperm.xlu0 %229, %v67
    %v231 = vpop.permute.xlu0 %230
    %232 = vset.pattern.permute.xlu0 0
    %233 = vperm.xlu0 %232, %v68
    %v234 = vpop.permute.xlu0 %233
    %235 = vset.pattern.permute.xlu0 0
    %236 = vperm.xlu0 %235, %v69
    %v237 = vpop.permute.xlu0 %236
    %238 = vset.pattern.permute.xlu0 0
    %239 = vperm.xlu0 %238, %v70
    %v240 = vpop.permute.xlu0 %239
    %241 = vset.pattern.permute.xlu0 0
    %242 = vperm.xlu0 %241, %v71
    %v243 = vpop.permute.xlu0 %242
    %244 = vset.pattern.permute.xlu0 0
    %245 = vperm.xlu0 %244, %v72
    %v246 = vpop.permute.xlu0 %245
    %247 = vset.pattern.permute.xlu0 0
    %248 = vperm.xlu0 %247, %v73
    %v249 = vpop.permute.xlu0 %248
    %250 = vset.pattern.permute.xlu0 0
    %251 = vperm.xlu0 %250, %v74
    %v252 = vpop.permute.xlu0 %251
    %253 = vset.pattern.permute.xlu0 0
    %254 = vperm.xlu0 %253, %v75
    %v255 = vpop.permute.xlu0 %254
    %256 = vset.pattern.permute.xlu0 0
    %257 = vperm.xlu0 %256, %v76
    %v258 = vpop.permute.xlu0 %257
    %259 = vset.pattern.permute.xlu0 0
    %260 = vperm.xlu0 %259, %v77
    %v261 = vpop.permute.xlu0 %260
    %262 = vset.pattern.permute.xlu0 0
    %263 = vperm.xlu0 %262, %v78
    %v264 = vpop.permute.xlu0 %263
    %265 = vset.pattern.permute.xlu0 0
    %266 = vperm.xlu0 %265, %v79
    %v267 = vpop.permute.xlu0 %266
    %268 = vset.pattern.permute.xlu0 0
    %269 = vperm.xlu0 %268, %v80
    %v270 = vpop.permute.xlu0 %269
    %271 = vset.pattern.permute.xlu0 0
    %272 = vperm.xlu0 %271, %v81
    %v273 = vpop.permute.xlu0 %272
    %vm274 = vcmp.eq.s32.totalorder %v84, %v17
    %vm275 = vcmp.eq.s32.totalorder %v87, %v17
    %vm276 = vcmp.eq.s32.totalorder %v90, %v17
    %vm277 = vcmp.eq.s32.totalorder %v93, %v17
    %vm278 = vcmp.eq.s32.totalorder %v96, %v17
    %vm279 = vcmp.eq.s32.totalorder %v99, %v17
    %vm280 = vcmp.eq.s32.totalorder %v102, %v17
    %vm281 = vcmp.eq.s32.totalorder %v105, %v17
    %vm282 = vcmp.eq.s32.totalorder %v108, %v17
    %vm283 = vcmp.eq.s32.totalorder %v111, %v17
    %vm284 = vcmp.eq.s32.totalorder %v114, %v17
    %vm285 = vcmp.eq.s32.totalorder %v117, %v17
    %vm286 = vcmp.eq.s32.totalorder %v120, %v17
    %vm287 = vcmp.eq.s32.totalorder %v123, %v17
    %vm288 = vcmp.eq.s32.totalorder %v126, %v17
    %vm289 = vcmp.eq.s32.totalorder %v129, %v17
    %vm290 = vcmp.eq.s32.totalorder %v132, %v17
    %vm291 = vcmp.eq.s32.totalorder %v135, %v17
    %vm292 = vcmp.eq.s32.totalorder %v138, %v17
    %vm293 = vcmp.eq.s32.totalorder %v141, %v17
    %vm294 = vcmp.eq.s32.totalorder %v144, %v17
    %vm295 = vcmp.eq.s32.totalorder %v147, %v17
    %vm296 = vcmp.eq.s32.totalorder %v150, %v17
    %vm297 = vcmp.eq.s32.totalorder %v153, %v17
    %vm298 = vcmp.eq.s32.totalorder %v156, %v17
    %vm299 = vcmp.eq.s32.totalorder %v159, %v17
    %vm300 = vcmp.eq.s32.totalorder %v162, %v17
    %vm301 = vcmp.eq.s32.totalorder %v165, %v17
    %vm302 = vcmp.eq.s32.totalorder %v168, %v17
    %vm303 = vcmp.eq.s32.totalorder %v171, %v17
    %vm304 = vcmp.eq.s32.totalorder %v174, %v17
    %vm305 = vcmp.eq.s32.totalorder %v177, %v17
    %vm306 = vcmp.eq.s32.totalorder %v180, %v17
    %vm307 = vcmp.eq.s32.totalorder %v183, %v17
    %vm308 = vcmp.eq.s32.totalorder %v186, %v17
    %vm309 = vcmp.eq.s32.totalorder %v189, %v17
    %vm310 = vcmp.eq.s32.totalorder %v192, %v17
    %vm311 = vcmp.eq.s32.totalorder %v195, %v17
    %vm312 = vcmp.eq.s32.totalorder %v198, %v17
    %vm313 = vcmp.eq.s32.totalorder %v201, %v17
    %vm314 = vcmp.eq.s32.totalorder %v204, %v17
    %vm315 = vcmp.eq.s32.totalorder %v207, %v17
    %vm316 = vcmp.eq.s32.totalorder %v210, %v17
    %vm317 = vcmp.eq.s32.totalorder %v213, %v17
    %vm318 = vcmp.eq.s32.totalorder %v216, %v17
    %vm319 = vcmp.eq.s32.totalorder %v219, %v17
    %vm320 = vcmp.eq.s32.totalorder %v222, %v17
    %vm321 = vcmp.eq.s32.totalorder %v225, %v17
    %vm322 = vcmp.eq.s32.totalorder %v228, %v17
    %vm323 = vcmp.eq.s32.totalorder %v231, %v17
    %vm324 = vcmp.eq.s32.totalorder %v234, %v17
    %vm325 = vcmp.eq.s32.totalorder %v237, %v17
    %vm326 = vcmp.eq.s32.totalorder %v240, %v17
    %vm327 = vcmp.eq.s32.totalorder %v243, %v17
    %vm328 = vcmp.eq.s32.totalorder %v246, %v17
    %vm329 = vcmp.eq.s32.totalorder %v249, %v17
    %vm330 = vcmp.eq.s32.totalorder %v252, %v17
    %vm331 = vcmp.eq.s32.totalorder %v255, %v17
    %vm332 = vcmp.eq.s32.totalorder %v258, %v17
    %vm333 = vcmp.eq.s32.totalorder %v261, %v17
    %vm334 = vcmp.eq.s32.totalorder %v264, %v17
    %vm335 = vcmp.eq.s32.totalorder %v267, %v17
    %vm336 = vcmp.eq.s32.totalorder %v270, %v17
    %vm337 = vcmp.eq.s32.totalorder %v273, %v17
    %v338 = vsel %vm274, 1, 0
    %v339 = vsel %vm275, 1, 0
    %v340 = vsel %vm276, 1, 0
    %v341 = vsel %vm277, 1, 0
    %v342 = vsel %vm278, 1, 0
    %v343 = vsel %vm279, 1, 0
    %v344 = vsel %vm280, 1, 0
    %v345 = vsel %vm281, 1, 0
    %v346 = vsel %vm282, 1, 0
    %v347 = vsel %vm283, 1, 0
    %v348 = vsel %vm284, 1, 0
    %v349 = vsel %vm285, 1, 0
    %v350 = vsel %vm286, 1, 0
    %v351 = vsel %vm287, 1, 0
    %v352 = vsel %vm288, 1, 0
    %v353 = vsel %vm289, 1, 0
    %v354 = vsel %vm290, 1, 0
    %v355 = vsel %vm291, 1, 0
    %v356 = vsel %vm292, 1, 0
    %v357 = vsel %vm293, 1, 0
    %v358 = vsel %vm294, 1, 0
    %v359 = vsel %vm295, 1, 0
    %v360 = vsel %vm296, 1, 0
    %v361 = vsel %vm297, 1, 0
    %v362 = vsel %vm298, 1, 0
    %v363 = vsel %vm299, 1, 0
    %v364 = vsel %vm300, 1, 0
    %v365 = vsel %vm301, 1, 0
    %v366 = vsel %vm302, 1, 0
    %v367 = vsel %vm303, 1, 0
    %v368 = vsel %vm304, 1, 0
    %v369 = vsel %vm305, 1, 0
    %v370 = vsel %vm306, 1, 0
    %v371 = vsel %vm307, 1, 0
    %v372 = vsel %vm308, 1, 0
    %v373 = vsel %vm309, 1, 0
    %v374 = vsel %vm310, 1, 0
    %v375 = vsel %vm311, 1, 0
    %v376 = vsel %vm312, 1, 0
    %v377 = vsel %vm313, 1, 0
    %v378 = vsel %vm314, 1, 0
    %v379 = vsel %vm315, 1, 0
    %v380 = vsel %vm316, 1, 0
    %v381 = vsel %vm317, 1, 0
    %v382 = vsel %vm318, 1, 0
    %v383 = vsel %vm319, 1, 0
    %v384 = vsel %vm320, 1, 0
    %v385 = vsel %vm321, 1, 0
    %v386 = vsel %vm322, 1, 0
    %v387 = vsel %vm323, 1, 0
    %v388 = vsel %vm324, 1, 0
    %v389 = vsel %vm325, 1, 0
    %v390 = vsel %vm326, 1, 0
    %v391 = vsel %vm327, 1, 0
    %v392 = vsel %vm328, 1, 0
    %v393 = vsel %vm329, 1, 0
    %v394 = vsel %vm330, 1, 0
    %v395 = vsel %vm331, 1, 0
    %v396 = vsel %vm332, 1, 0
    %v397 = vsel %vm333, 1, 0
    %v398 = vsel %vm334, 1, 0
    %v399 = vsel %vm335, 1, 0
    %v400 = vsel %vm336, 1, 0
    %v401 = vsel %vm337, 1, 0
    %v402 = vcvt.s32.f32 %v338
    %v403 = vcvt.s32.f32 %v339
    %v404 = vcvt.s32.f32 %v340
    %v405 = vcvt.s32.f32 %v341
    %v406 = vcvt.s32.f32 %v342
    %v407 = vcvt.s32.f32 %v343
    %v408 = vcvt.s32.f32 %v344
    %v409 = vcvt.s32.f32 %v345
    %v410 = vcvt.s32.f32 %v346
    %v411 = vcvt.s32.f32 %v347
    %v412 = vcvt.s32.f32 %v348
    %v413 = vcvt.s32.f32 %v349
    %v414 = vcvt.s32.f32 %v350
    %v415 = vcvt.s32.f32 %v351
    %v416 = vcvt.s32.f32 %v352
    %v417 = vcvt.s32.f32 %v353
    %v418 = vcvt.s32.f32 %v354
    %v419 = vcvt.s32.f32 %v355
    %v420 = vcvt.s32.f32 %v356
    %v421 = vcvt.s32.f32 %v357
    %v422 = vcvt.s32.f32 %v358
    %v423 = vcvt.s32.f32 %v359
    %v424 = vcvt.s32.f32 %v360
    %v425 = vcvt.s32.f32 %v361
    %v426 = vcvt.s32.f32 %v362
    %v427 = vcvt.s32.f32 %v363
    %v428 = vcvt.s32.f32 %v364
    %v429 = vcvt.s32.f32 %v365
    %v430 = vcvt.s32.f32 %v366
    %v431 = vcvt.s32.f32 %v367
    %v432 = vcvt.s32.f32 %v368
    %v433 = vcvt.s32.f32 %v369
    %v434 = vcvt.s32.f32 %v370
    %v435 = vcvt.s32.f32 %v371
    %v436 = vcvt.s32.f32 %v372
    %v437 = vcvt.s32.f32 %v373
    %v438 = vcvt.s32.f32 %v374
    %v439 = vcvt.s32.f32 %v375
    %v440 = vcvt.s32.f32 %v376
    %v441 = vcvt.s32.f32 %v377
    %v442 = vcvt.s32.f32 %v378
    %v443 = vcvt.s32.f32 %v379
    %v444 = vcvt.s32.f32 %v380
    %v445 = vcvt.s32.f32 %v381
    %v446 = vcvt.s32.f32 %v382
    %v447 = vcvt.s32.f32 %v383
    %v448 = vcvt.s32.f32 %v384
    %v449 = vcvt.s32.f32 %v385
    %v450 = vcvt.s32.f32 %v386
    %v451 = vcvt.s32.f32 %v387
    %v452 = vcvt.s32.f32 %v388
    %v453 = vcvt.s32.f32 %v389
    %v454 = vcvt.s32.f32 %v390
    %v455 = vcvt.s32.f32 %v391
    %v456 = vcvt.s32.f32 %v392
    %v457 = vcvt.s32.f32 %v393
    %v458 = vcvt.s32.f32 %v394
    %v459 = vcvt.s32.f32 %v395
    %v460 = vcvt.s32.f32 %v396
    %v461 = vcvt.s32.f32 %v397
    %v462 = vcvt.s32.f32 %v398
    %v463 = vcvt.s32.f32 %v399
    %v464 = vcvt.s32.f32 %v400
    %v465 = vcvt.s32.f32 %v401
    %vm466 = vcmask 130048
    %v468 = vsel %vm466, %v402, 0
    %v471 = vsel %vm466, %v403, 0
    %v474 = vsel %vm466, %v404, 0
    %v477 = vsel %vm466, %v405, 0
    %v480 = vsel %vm466, %v406, 0
    %v483 = vsel %vm466, %v407, 0
    %v486 = vsel %vm466, %v408, 0
    %v489 = vsel %vm466, %v409, 0
    %v492 = vsel %vm466, %v410, 0
    %v495 = vsel %vm466, %v411, 0
    %v498 = vsel %vm466, %v412, 0
    %v501 = vsel %vm466, %v413, 0
    %v504 = vsel %vm466, %v414, 0
    %v507 = vsel %vm466, %v415, 0
    %v510 = vsel %vm466, %v416, 0
    %v513 = vsel %vm466, %v417, 0
    %v516 = vsel %vm466, %v418, 0
    %v519 = vsel %vm466, %v419, 0
    %v522 = vsel %vm466, %v420, 0
    %v525 = vsel %vm466, %v421, 0
    %v528 = vsel %vm466, %v422, 0
    %v531 = vsel %vm466, %v423, 0
    %v534 = vsel %vm466, %v424, 0
    %v537 = vsel %vm466, %v425, 0
    %v540 = vsel %vm466, %v426, 0
    %v543 = vsel %vm466, %v427, 0
    %v546 = vsel %vm466, %v428, 0
    %v549 = vsel %vm466, %v429, 0
    %v552 = vsel %vm466, %v430, 0
    %v555 = vsel %vm466, %v431, 0
    %v558 = vsel %vm466, %v432, 0
    %v561 = vsel %vm466, %v433, 0
    %v564 = vsel %vm466, %v434, 0
    %v567 = vsel %vm466, %v435, 0
    %v570 = vsel %vm466, %v436, 0
    %v573 = vsel %vm466, %v437, 0
    %v576 = vsel %vm466, %v438, 0
    %v579 = vsel %vm466, %v439, 0
    %v582 = vsel %vm466, %v440, 0
    %v585 = vsel %vm466, %v441, 0
    %v588 = vsel %vm466, %v442, 0
    %v591 = vsel %vm466, %v443, 0
    %v594 = vsel %vm466, %v444, 0
    %v597 = vsel %vm466, %v445, 0
    %v600 = vsel %vm466, %v446, 0
    %v603 = vsel %vm466, %v447, 0
    %v606 = vsel %vm466, %v448, 0
    %v609 = vsel %vm466, %v449, 0
    %v612 = vsel %vm466, %v450, 0
    %v615 = vsel %vm466, %v451, 0
    %v618 = vsel %vm466, %v452, 0
    %v621 = vsel %vm466, %v453, 0
    %v624 = vsel %vm466, %v454, 0
    %v627 = vsel %vm466, %v455, 0
    %v630 = vsel %vm466, %v456, 0
    %v633 = vsel %vm466, %v457, 0
    %v636 = vsel %vm466, %v458, 0
    %v639 = vsel %vm466, %v459, 0
    %v642 = vsel %vm466, %v460, 0
    %v645 = vsel %vm466, %v461, 0
    %v648 = vsel %vm466, %v462, 0
    %v651 = vsel %vm466, %v463, 0
    %v654 = vsel %vm466, %v464, 0
    %v657 = vsel %vm466, %v465, 0
    %659 = vmatprep.subr.mxu0 %v13
    %660 = vmatpush1.msra.mxu0 %v12
    %661 = vmatprep.subr.mxu0 %v15
    %662 = vmatpush1.msra.mxu0 %v14
    %663 = vmatprep.subr.mxu0 0.0
    %664 = vmatpush1.msra.mxu0 0.0
    %665 = vmatprep.subr.mxu0 0.0
    %666 = vmatpush1.msra.mxu0 0.0
    %667 = vmatprep.subr.mxu0 0.0
    %668 = vmatpush1.msra.mxu0 0.0
    %669 = vmatprep.subr.mxu0 0.0
    %670 = vmatpush1.msra.mxu0 0.0
    %671 = vmatprep.subr.mxu0 0.0
    %672 = vmatpush1.msra.mxu0 0.0
    %673 = vmatprep.subr.mxu0 0.0
    %674 = vmatpush1.msra.mxu0 0.0
    %675 = vmatprep.subr.mxu0 0.0
    %676 = vmatpush1.msra.mxu0 0.0
    %677 = vmatprep.subr.mxu0 0.0
    %678 = vmatpush1.msra.mxu0 0.0
    %679 = vmatprep.subr.mxu0 0.0
    %680 = vmatpush1.msra.mxu0 0.0
    %681 = vmatprep.subr.mxu0 0.0
    %682 = vmatpush1.msra.mxu0 0.0
    %683 = vmatprep.subr.mxu0 0.0
    %684 = vmatpush1.msra.mxu0 0.0
    %685 = vmatprep.subr.mxu0 0.0
    %686 = vmatpush1.msra.mxu0 0.0
    %687 = vmatprep.subr.mxu0 0.0
    %688 = vmatpush1.msra.mxu0 0.0
    %689 = vmatprep.subr.mxu0 0.0
    %690 = vmatpush1.msra.mxu0 0.0
    %691 = vmatprep.subr.mxu0 0.0
    %692 = vmatpush1.msra.mxu0 0.0
    %693 = vmatprep.subr.mxu0 0.0
    %694 = vmatpush1.msra.mxu0 0.0
    %695 = vmatprep.subr.mxu0 0.0
    %696 = vmatpush1.msra.mxu0 0.0
    %697 = vmatprep.subr.mxu0 0.0
    %698 = vmatpush1.msra.mxu0 0.0
    %699 = vmatprep.subr.mxu0 0.0
    %700 = vmatpush1.msra.mxu0 0.0
    %701 = vmatprep.subr.mxu0 0.0
    %702 = vmatpush1.msra.mxu0 0.0
    %703 = vmatprep.subr.mxu0 0.0
    %704 = vmatpush1.msra.mxu0 0.0
    %705 = vmatprep.subr.mxu0 0.0
    %706 = vmatpush1.msra.mxu0 0.0
    %707 = vmatprep.subr.mxu0 0.0
    %708 = vmatpush1.msra.mxu0 0.0
    %709 = vmatprep.subr.mxu0 0.0
    %710 = vmatpush1.msra.mxu0 0.0
    %711 = vmatprep.subr.mxu0 0.0
    %712 = vmatpush1.msra.mxu0 0.0
    %713 = vmatprep.subr.mxu0 0.0
    %714 = vmatpush1.msra.mxu0 0.0
    %715 = vmatprep.subr.mxu0 0.0
    %716 = vmatpush1.msra.mxu0 0.0
    %717 = vmatprep.subr.mxu0 0.0
    %718 = vmatpush1.msra.mxu0 0.0
    %719 = vmatprep.subr.mxu0 0.0
    %720 = vmatpush1.msra.mxu0 0.0
    %721 = vmatprep.subr.mxu0 0.0
    %722 = vmatpush1.msra.mxu0 0.0
    %723 = vmatprep.mubr.f32.mxu0 0.0
    %724 = vmatmul.mubr.f32.gmra.mrb[0].mxu0 %v468
    %v725 = vpop.f32.mrb[0].mxu0
    %v726 = vadd.f32 0.0, %v725
    %v727 = vpop.f32.mrb[0].mxu0
    %v728 = vadd.f32 0.0, %v727
    %729 = vmatprep.mubr.f32.mxu0 0.0
    %730 = vmatmul.mubr.f32.gmra.mrb[0].mxu0 %v471
    %v731 = vpop.f32.mrb[0].mxu0
    %v732 = vadd.f32 0.0, %v731
    %v733 = vpop.f32.mrb[0].mxu0
    %v734 = vadd.f32 0.0, %v733
    %735 = vmatprep.mubr.f32.mxu0 0.0
    %736 = vmatmul.mubr.f32.gmra.mrb[0].mxu0 %v474
    %v737 = vpop.f32.mrb[0].mxu0
    %v738 = vadd.f32 0.0, %v737
    %v739 = vpop.f32.mrb[0].mxu0
    %v740 = vadd.f32 0.0, %v739
    %741 = vmatprep.mubr.f32.mxu0 0.0
    %742 = vmatmul.mubr.f32.gmra.mrb[0].mxu0 %v477
    %v743 = vpop.f32.mrb[0].mxu0
    %v744 = vadd.f32 0.0, %v743
    %v745 = vpop.f32.mrb[0].mxu0
    %v746 = vadd.f32 0.0, %v745
    %747 = vmatprep.mubr.f32.mxu0 0.0
    %748 = vmatmul.mubr.f32.gmra.mrb[0].mxu0 %v480
    %v749 = vpop.f32.mrb[0].mxu0
    %v750 = vadd.f32 0.0, %v749
    %v751 = vpop.f32.mrb[0].mxu0
    %v752 = vadd.f32 0.0, %v751
    %753 = vmatprep.mubr.f32.mxu0 0.0
    %754 = vmatmul.mubr.f32.gmra.mrb[0].mxu0 %v483
    %v755 = vpop.f32.mrb[0].mxu0
    %v756 = vadd.f32 0.0, %v755
    %v757 = vpop.f32.mrb[0].mxu0
    %v758 = vadd.f32 0.0, %v757
    %759 = vmatprep.mubr.f32.mxu0 0.0
    %760 = vmatmul.mubr.f32.gmra.mrb[0].mxu0 %v486
    %v761 = vpop.f32.mrb[0].mxu0
    %v762 = vadd.f32 0.0, %v761
    %v763 = vpop.f32.mrb[0].mxu0
    %v764 = vadd.f32 0.0, %v763
    %765 = vmatprep.mubr.f32.mxu0 0.0
    %766 = vmatmul.mubr.f32.gmra.mrb[0].mxu0 %v489
    %v767 = vpop.f32.mrb[0].mxu0
    %v768 = vadd.f32 0.0, %v767
    %v769 = vpop.f32.mrb[0].mxu0
    %v770 = vadd.f32 0.0, %v769
    %771 = vmatprep.mubr.f32.mxu0 0.0
    %772 = vmatmul.mubr.f32.gmra.mrb[0].mxu0 %v492
    %v773 = vpop.f32.mrb[0].mxu0
    %v774 = vadd.f32 0.0, %v773
    %v775 = vpop.f32.mrb[0].mxu0
    %v776 = vadd.f32 0.0, %v775
    %777 = vmatprep.mubr.f32.mxu0 0.0
    %778 = vmatmul.mubr.f32.gmra.mrb[0].mxu0 %v495
    %v779 = vpop.f32.mrb[0].mxu0
    %v780 = vadd.f32 0.0, %v779
    %v781 = vpop.f32.mrb[0].mxu0
    %v782 = vadd.f32 0.0, %v781
    %783 = vmatprep.mubr.f32.mxu0 0.0
    %784 = vmatmul.mubr.f32.gmra.mrb[0].mxu0 %v498
    %v785 = vpop.f32.mrb[0].mxu0
    %v786 = vadd.f32 0.0, %v785
    %v787 = vpop.f32.mrb[0].mxu0
    %v788 = vadd.f32 0.0, %v787
    %789 = vmatprep.mubr.f32.mxu0 0.0
    %790 = vmatmul.mubr.f32.gmra.mrb[0].mxu0 %v501
    %v791 = vpop.f32.mrb[0].mxu0
    %v792 = vadd.f32 0.0, %v791
    %v793 = vpop.f32.mrb[0].mxu0
    %v794 = vadd.f32 0.0, %v793
    %795 = vmatprep.mubr.f32.mxu0 0.0
    %796 = vmatmul.mubr.f32.gmra.mrb[0].mxu0 %v504
    %v797 = vpop.f32.mrb[0].mxu0
    %v798 = vadd.f32 0.0, %v797
    %v799 = vpop.f32.mrb[0].mxu0
    %v800 = vadd.f32 0.0, %v799
    %801 = vmatprep.mubr.f32.mxu0 0.0
    %802 = vmatmul.mubr.f32.gmra.mrb[0].mxu0 %v507
    %v803 = vpop.f32.mrb[0].mxu0
    %v804 = vadd.f32 0.0, %v803
    %v805 = vpop.f32.mrb[0].mxu0
    %v806 = vadd.f32 0.0, %v805
    %807 = vmatprep.mubr.f32.mxu0 0.0
    %808 = vmatmul.mubr.f32.gmra.mrb[0].mxu0 %v510
    %v809 = vpop.f32.mrb[0].mxu0
    %v810 = vadd.f32 0.0, %v809
    %v811 = vpop.f32.mrb[0].mxu0
    %v812 = vadd.f32 0.0, %v811
    %813 = vmatprep.mubr.f32.mxu0 0.0
    %814 = vmatmul.mubr.f32.gmra.mrb[0].mxu0 %v513
    %v815 = vpop.f32.mrb[0].mxu0
    %v816 = vadd.f32 0.0, %v815
    %v817 = vpop.f32.mrb[0].mxu0
    %v818 = vadd.f32 0.0, %v817
    %819 = vmatprep.mubr.f32.mxu0 0.0
    %820 = vmatmul.mubr.f32.gmra.mrb[0].mxu0 %v516
    %v821 = vpop.f32.mrb[0].mxu0
    %v822 = vadd.f32 0.0, %v821
    %v823 = vpop.f32.mrb[0].mxu0
    %v824 = vadd.f32 0.0, %v823
    %825 = vmatprep.mubr.f32.mxu0 0.0
    %826 = vmatmul.mubr.f32.gmra.mrb[0].mxu0 %v519
    %v827 = vpop.f32.mrb[0].mxu0
    %v828 = vadd.f32 0.0, %v827
    %v829 = vpop.f32.mrb[0].mxu0
    %v830 = vadd.f32 0.0, %v829
    %831 = vmatprep.mubr.f32.mxu0 0.0
    %832 = vmatmul.mubr.f32.gmra.mrb[0].mxu0 %v522
    %v833 = vpop.f32.mrb[0].mxu0
    %v834 = vadd.f32 0.0, %v833
    %v835 = vpop.f32.mrb[0].mxu0
    %v836 = vadd.f32 0.0, %v835
    %837 = vmatprep.mubr.f32.mxu0 0.0
    %838 = vmatmul.mubr.f32.gmra.mrb[0].mxu0 %v525
    %v839 = vpop.f32.mrb[0].mxu0
    %v840 = vadd.f32 0.0, %v839
    %v841 = vpop.f32.mrb[0].mxu0
    %v842 = vadd.f32 0.0, %v841
    %843 = vmatprep.mubr.f32.mxu0 0.0
    %844 = vmatmul.mubr.f32.gmra.mrb[0].mxu0 %v528
    %v845 = vpop.f32.mrb[0].mxu0
    %v846 = vadd.f32 0.0, %v845
    %v847 = vpop.f32.mrb[0].mxu0
    %v848 = vadd.f32 0.0, %v847
    %849 = vmatprep.mubr.f32.mxu0 0.0
    %850 = vmatmul.mubr.f32.gmra.mrb[0].mxu0 %v531
    %v851 = vpop.f32.mrb[0].mxu0
    %v852 = vadd.f32 0.0, %v851
    %v853 = vpop.f32.mrb[0].mxu0
    %v854 = vadd.f32 0.0, %v853
    %855 = vmatprep.mubr.f32.mxu0 0.0
    %856 = vmatmul.mubr.f32.gmra.mrb[0].mxu0 %v534
    %v857 = vpop.f32.mrb[0].mxu0
    %v858 = vadd.f32 0.0, %v857
    %v859 = vpop.f32.mrb[0].mxu0
    %v860 = vadd.f32 0.0, %v859
    %861 = vmatprep.mubr.f32.mxu0 0.0
    %862 = vmatmul.mubr.f32.gmra.mrb[0].mxu0 %v537
    %v863 = vpop.f32.mrb[0].mxu0
    %v864 = vadd.f32 0.0, %v863
    %v865 = vpop.f32.mrb[0].mxu0
    %v866 = vadd.f32 0.0, %v865
    %867 = vmatprep.mubr.f32.mxu0 0.0
    %868 = vmatmul.mubr.f32.gmra.mrb[0].mxu0 %v540
    %v869 = vpop.f32.mrb[0].mxu0
    %v870 = vadd.f32 0.0, %v869
    %v871 = vpop.f32.mrb[0].mxu0
    %v872 = vadd.f32 0.0, %v871
    %873 = vmatprep.mubr.f32.mxu0 0.0
    %874 = vmatmul.mubr.f32.gmra.mrb[0].mxu0 %v543
    %v875 = vpop.f32.mrb[0].mxu0
    %v876 = vadd.f32 0.0, %v875
    %v877 = vpop.f32.mrb[0].mxu0
    %v878 = vadd.f32 0.0, %v877
    %879 = vmatprep.mubr.f32.mxu0 0.0
    %880 = vmatmul.mubr.f32.gmra.mrb[0].mxu0 %v546
    %v881 = vpop.f32.mrb[0].mxu0
    %v882 = vadd.f32 0.0, %v881
    %v883 = vpop.f32.mrb[0].mxu0
    %v884 = vadd.f32 0.0, %v883
    %885 = vmatprep.mubr.f32.mxu0 0.0
    %886 = vmatmul.mubr.f32.gmra.mrb[0].mxu0 %v549
    %v887 = vpop.f32.mrb[0].mxu0
    %v888 = vadd.f32 0.0, %v887
    %v889 = vpop.f32.mrb[0].mxu0
    %v890 = vadd.f32 0.0, %v889
    %891 = vmatprep.mubr.f32.mxu0 0.0
    %892 = vmatmul.mubr.f32.gmra.mrb[0].mxu0 %v552
    %v893 = vpop.f32.mrb[0].mxu0
    %v894 = vadd.f32 0.0, %v893
    %v895 = vpop.f32.mrb[0].mxu0
    %v896 = vadd.f32 0.0, %v895
    %897 = vmatprep.mubr.f32.mxu0 0.0
    %898 = vmatmul.mubr.f32.gmra.mrb[0].mxu0 %v555
    %v899 = vpop.f32.mrb[0].mxu0
    %v900 = vadd.f32 0.0, %v899
    %v901 = vpop.f32.mrb[0].mxu0
    %v902 = vadd.f32 0.0, %v901
    %903 = vmatprep.mubr.f32.mxu0 0.0
    %904 = vmatmul.mubr.f32.gmra.mrb[0].mxu0 %v558
    %v905 = vpop.f32.mrb[0].mxu0
    %v906 = vadd.f32 0.0, %v905
    %v907 = vpop.f32.mrb[0].mxu0
    %v908 = vadd.f32 0.0, %v907
    %909 = vmatprep.mubr.f32.mxu0 0.0
    %910 = vmatmul.mubr.f32.gmra.mrb[0].mxu0 %v561
    %v911 = vpop.f32.mrb[0].mxu0
    %v912 = vadd.f32 0.0, %v911
    %v913 = vpop.f32.mrb[0].mxu0
    %v914 = vadd.f32 0.0, %v913
    %915 = vmatprep.mubr.f32.mxu0 0.0
    %916 = vmatmul.mubr.f32.gmra.mrb[0].mxu0 %v564
    %v917 = vpop.f32.mrb[0].mxu0
    %v918 = vadd.f32 0.0, %v917
    %v919 = vpop.f32.mrb[0].mxu0
    %v920 = vadd.f32 0.0, %v919
    %921 = vmatprep.mubr.f32.mxu0 0.0
    %922 = vmatmul.mubr.f32.gmra.mrb[0].mxu0 %v567
    %v923 = vpop.f32.mrb[0].mxu0
    %v924 = vadd.f32 0.0, %v923
    %v925 = vpop.f32.mrb[0].mxu0
    %v926 = vadd.f32 0.0, %v925
    %927 = vmatprep.mubr.f32.mxu0 0.0
    %928 = vmatmul.mubr.f32.gmra.mrb[0].mxu0 %v570
    %v929 = vpop.f32.mrb[0].mxu0
    %v930 = vadd.f32 0.0, %v929
    %v931 = vpop.f32.mrb[0].mxu0
    %v932 = vadd.f32 0.0, %v931
    %933 = vmatprep.mubr.f32.mxu0 0.0
    %934 = vmatmul.mubr.f32.gmra.mrb[0].mxu0 %v573
    %v935 = vpop.f32.mrb[0].mxu0
    %v936 = vadd.f32 0.0, %v935
    %v937 = vpop.f32.mrb[0].mxu0
    %v938 = vadd.f32 0.0, %v937
    %939 = vmatprep.mubr.f32.mxu0 0.0
    %940 = vmatmul.mubr.f32.gmra.mrb[0].mxu0 %v576
    %v941 = vpop.f32.mrb[0].mxu0
    %v942 = vadd.f32 0.0, %v941
    %v943 = vpop.f32.mrb[0].mxu0
    %v944 = vadd.f32 0.0, %v943
    %945 = vmatprep.mubr.f32.mxu0 0.0
    %946 = vmatmul.mubr.f32.gmra.mrb[0].mxu0 %v579
    %v947 = vpop.f32.mrb[0].mxu0
    %v948 = vadd.f32 0.0, %v947
    %v949 = vpop.f32.mrb[0].mxu0
    %v950 = vadd.f32 0.0, %v949
    %951 = vmatprep.mubr.f32.mxu0 0.0
    %952 = vmatmul.mubr.f32.gmra.mrb[0].mxu0 %v582
    %v953 = vpop.f32.mrb[0].mxu0
    %v954 = vadd.f32 0.0, %v953
    %v955 = vpop.f32.mrb[0].mxu0
    %v956 = vadd.f32 0.0, %v955
    %957 = vmatprep.mubr.f32.mxu0 0.0
    %958 = vmatmul.mubr.f32.gmra.mrb[0].mxu0 %v585
    %v959 = vpop.f32.mrb[0].mxu0
    %v960 = vadd.f32 0.0, %v959
    %v961 = vpop.f32.mrb[0].mxu0
    %v962 = vadd.f32 0.0, %v961
    %963 = vmatprep.mubr.f32.mxu0 0.0
    %964 = vmatmul.mubr.f32.gmra.mrb[0].mxu0 %v588
    %v965 = vpop.f32.mrb[0].mxu0
    %v966 = vadd.f32 0.0, %v965
    %v967 = vpop.f32.mrb[0].mxu0
    %v968 = vadd.f32 0.0, %v967
    %969 = vmatprep.mubr.f32.mxu0 0.0
    %970 = vmatmul.mubr.f32.gmra.mrb[0].mxu0 %v591
    %v971 = vpop.f32.mrb[0].mxu0
    %v972 = vadd.f32 0.0, %v971
    %v973 = vpop.f32.mrb[0].mxu0
    %v974 = vadd.f32 0.0, %v973
    %975 = vmatprep.mubr.f32.mxu0 0.0
    %976 = vmatmul.mubr.f32.gmra.mrb[0].mxu0 %v594
    %v977 = vpop.f32.mrb[0].mxu0
    %v978 = vadd.f32 0.0, %v977
    %v979 = vpop.f32.mrb[0].mxu0
    %v980 = vadd.f32 0.0, %v979
    %981 = vmatprep.mubr.f32.mxu0 0.0
    %982 = vmatmul.mubr.f32.gmra.mrb[0].mxu0 %v597
    %v983 = vpop.f32.mrb[0].mxu0
    %v984 = vadd.f32 0.0, %v983
    %v985 = vpop.f32.mrb[0].mxu0
    %v986 = vadd.f32 0.0, %v985
    %987 = vmatprep.mubr.f32.mxu0 0.0
    %988 = vmatmul.mubr.f32.gmra.mrb[0].mxu0 %v600
    %v989 = vpop.f32.mrb[0].mxu0
    %v990 = vadd.f32 0.0, %v989
    %v991 = vpop.f32.mrb[0].mxu0
    %v992 = vadd.f32 0.0, %v991
    %993 = vmatprep.mubr.f32.mxu0 0.0
    %994 = vmatmul.mubr.f32.gmra.mrb[0].mxu0 %v603
    %v995 = vpop.f32.mrb[0].mxu0
    %v996 = vadd.f32 0.0, %v995
    %v997 = vpop.f32.mrb[0].mxu0
    %v998 = vadd.f32 0.0, %v997
    %999 = vmatprep.mubr.f32.mxu0 0.0
    %1000 = vmatmul.mubr.f32.gmra.mrb[0].mxu0 %v606
    %v1001 = vpop.f32.mrb[0].mxu0
    %v1002 = vadd.f32 0.0, %v1001
    %v1003 = vpop.f32.mrb[0].mxu0
    %v1004 = vadd.f32 0.0, %v1003
    %1005 = vmatprep.mubr.f32.mxu0 0.0
    %1006 = vmatmul.mubr.f32.gmra.mrb[0].mxu0 %v609
    %v1007 = vpop.f32.mrb[0].mxu0
    %v1008 = vadd.f32 0.0, %v1007
    %v1009 = vpop.f32.mrb[0].mxu0
    %v1010 = vadd.f32 0.0, %v1009
    %1011 = vmatprep.mubr.f32.mxu0 0.0
    %1012 = vmatmul.mubr.f32.gmra.mrb[0].mxu0 %v612
    %v1013 = vpop.f32.mrb[0].mxu0
    %v1014 = vadd.f32 0.0, %v1013
    %v1015 = vpop.f32.mrb[0].mxu0
    %v1016 = vadd.f32 0.0, %v1015
    %1017 = vmatprep.mubr.f32.mxu0 0.0
    %1018 = vmatmul.mubr.f32.gmra.mrb[0].mxu0 %v615
    %v1019 = vpop.f32.mrb[0].mxu0
    %v1020 = vadd.f32 0.0, %v1019
    %v1021 = vpop.f32.mrb[0].mxu0
    %v1022 = vadd.f32 0.0, %v1021
    %1023 = vmatprep.mubr.f32.mxu0 0.0
    %1024 = vmatmul.mubr.f32.gmra.mrb[0].mxu0 %v618
    %v1025 = vpop.f32.mrb[0].mxu0
    %v1026 = vadd.f32 0.0, %v1025
    %v1027 = vpop.f32.mrb[0].mxu0
    %v1028 = vadd.f32 0.0, %v1027
    %1029 = vmatprep.mubr.f32.mxu0 0.0
    %1030 = vmatmul.mubr.f32.gmra.mrb[0].mxu0 %v621
    %v1031 = vpop.f32.mrb[0].mxu0
    %v1032 = vadd.f32 0.0, %v1031
    %v1033 = vpop.f32.mrb[0].mxu0
    %v1034 = vadd.f32 0.0, %v1033
    %1035 = vmatprep.mubr.f32.mxu0 0.0
    %1036 = vmatmul.mubr.f32.gmra.mrb[0].mxu0 %v624
    %v1037 = vpop.f32.mrb[0].mxu0
    %v1038 = vadd.f32 0.0, %v1037
    %v1039 = vpop.f32.mrb[0].mxu0
    %v1040 = vadd.f32 0.0, %v1039
    %1041 = vmatprep.mubr.f32.mxu0 0.0
    %1042 = vmatmul.mubr.f32.gmra.mrb[0].mxu0 %v627
    %v1043 = vpop.f32.mrb[0].mxu0
    %v1044 = vadd.f32 0.0, %v1043
    %v1045 = vpop.f32.mrb[0].mxu0
    %v1046 = vadd.f32 0.0, %v1045
    %1047 = vmatprep.mubr.f32.mxu0 0.0
    %1048 = vmatmul.mubr.f32.gmra.mrb[0].mxu0 %v630
    %v1049 = vpop.f32.mrb[0].mxu0
    %v1050 = vadd.f32 0.0, %v1049
    %v1051 = vpop.f32.mrb[0].mxu0
    %v1052 = vadd.f32 0.0, %v1051
    %1053 = vmatprep.mubr.f32.mxu0 0.0
    %1054 = vmatmul.mubr.f32.gmra.mrb[0].mxu0 %v633
    %v1055 = vpop.f32.mrb[0].mxu0
    %v1056 = vadd.f32 0.0, %v1055
    %v1057 = vpop.f32.mrb[0].mxu0
    %v1058 = vadd.f32 0.0, %v1057
    %1059 = vmatprep.mubr.f32.mxu0 0.0
    %1060 = vmatmul.mubr.f32.gmra.mrb[0].mxu0 %v636
    %v1061 = vpop.f32.mrb[0].mxu0
    %v1062 = vadd.f32 0.0, %v1061
    %v1063 = vpop.f32.mrb[0].mxu0
    %v1064 = vadd.f32 0.0, %v1063
    %1065 = vmatprep.mubr.f32.mxu0 0.0
    %1066 = vmatmul.mubr.f32.gmra.mrb[0].mxu0 %v639
    %v1067 = vpop.f32.mrb[0].mxu0
    %v1068 = vadd.f32 0.0, %v1067
    %v1069 = vpop.f32.mrb[0].mxu0
    %v1070 = vadd.f32 0.0, %v1069
    %1071 = vmatprep.mubr.f32.mxu0 0.0
    %1072 = vmatmul.mubr.f32.gmra.mrb[0].mxu0 %v642
    %v1073 = vpop.f32.mrb[0].mxu0
    %v1074 = vadd.f32 0.0, %v1073
    %v1075 = vpop.f32.mrb[0].mxu0
    %v1076 = vadd.f32 0.0, %v1075
    %1077 = vmatprep.mubr.f32.mxu0 0.0
    %1078 = vmatmul.mubr.f32.gmra.mrb[0].mxu0 %v645
    %v1079 = vpop.f32.mrb[0].mxu0
    %v1080 = vadd.f32 0.0, %v1079
    %v1081 = vpop.f32.mrb[0].mxu0
    %v1082 = vadd.f32 0.0, %v1081
    %1083 = vmatprep.mubr.f32.mxu0 0.0
    %1084 = vmatmul.mubr.f32.gmra.mrb[0].mxu0 %v648
    %v1085 = vpop.f32.mrb[0].mxu0
    %v1086 = vadd.f32 0.0, %v1085
    %v1087 = vpop.f32.mrb[0].mxu0
    %v1088 = vadd.f32 0.0, %v1087
    %1089 = vmatprep.mubr.f32.mxu0 0.0
    %1090 = vmatmul.mubr.f32.gmra.mrb[0].mxu0 %v651
    %v1091 = vpop.f32.mrb[0].mxu0
    %v1092 = vadd.f32 0.0, %v1091
    %v1093 = vpop.f32.mrb[0].mxu0
    %v1094 = vadd.f32 0.0, %v1093
    %1095 = vmatprep.mubr.f32.mxu0 0.0
    %1096 = vmatmul.mubr.f32.gmra.mrb[0].mxu0 %v654
    %v1097 = vpop.f32.mrb[0].mxu0
    %v1098 = vadd.f32 0.0, %v1097
    %v1099 = vpop.f32.mrb[0].mxu0
    %v1100 = vadd.f32 0.0, %v1099
    %1101 = vmatprep.mubr.f32.mxu0 0.0
    %1102 = vmatmul.mubr.f32.gmra.mrb[0].mxu0 %v657
    %v1103 = vpop.f32.mrb[0].mxu0
    %v1104 = vadd.f32 0.0, %v1103
    %v1105 = vpop.f32.mrb[0].mxu0
    %v1106 = vadd.f32 0.0, %v1105
    %1107 = vdwg.mxu0
    %1108 = vst [vmem:[#allocation2] sm:$0xff] %v726
    %1109 = vst [vmem:[#allocation2 + $0x8] sm:$0xff] %v728
    %1110 = vst [vmem:[#allocation2 + $0x10] sm:$0xff] %v732
    %1111 = vst [vmem:[#allocation2 + $0x18] sm:$0xff] %v734
    %1112 = vst [vmem:[#allocation2 + $0x20] sm:$0xff] %v738
    %1113 = vst [vmem:[#allocation2 + $0x28] sm:$0xff] %v740
    %1114 = vst [vmem:[#allocation2 + $0x30] sm:$0xff] %v744
    %1115 = vst [vmem:[#allocation2 + $0x38] sm:$0xff] %v746
    %1116 = vst [vmem:[#allocation2 + $0x40] sm:$0xff] %v750
    %1117 = vst [vmem:[#allocation2 + $0x48] sm:$0xff] %v752
    %1118 = vst [vmem:[#allocation2 + $0x50] sm:$0xff] %v756
    %1119 = vst [vmem:[#allocation2 + $0x58] sm:$0xff] %v758
    %1120 = vst [vmem:[#allocation2 + $0x60] sm:$0xff] %v762
    %1121 = vst [vmem:[#allocation2 + $0x68] sm:$0xff] %v764
    %1122 = vst [vmem:[#allocation2 + $0x70] sm:$0xff] %v768
    %1123 = vst [vmem:[#allocation2 + $0x78] sm:$0xff] %v770
    %1124 = vst [vmem:[#allocation2 + $0x80] sm:$0xff] %v774
    %1125 = vst [vmem:[#allocation2 + $0x88] sm:$0xff] %v776
    %1126 = vst [vmem:[#allocation2 + $0x90] sm:$0xff] %v780
    %1127 = vst [vmem:[#allocation2 + $0x98] sm:$0xff] %v782
    %1128 = vst [vmem:[#allocation2 + $0xa0] sm:$0xff] %v786
    %1129 = vst [vmem:[#allocation2 + $0xa8] sm:$0xff] %v788
    %1130 = vst [vmem:[#allocation2 + $0xb0] sm:$0xff] %v792
    %1131 = vst [vmem:[#allocation2 + $0xb8] sm:$0xff] %v794
    %1132 = vst [vmem:[#allocation2 + $0xc0] sm:$0xff] %v798
    %1133 = vst [vmem:[#allocation2 + $0xc8] sm:$0xff] %v800
    %1134 = vst [vmem:[#allocation2 + $0xd0] sm:$0xff] %v804
    %1135 = vst [vmem:[#allocation2 + $0xd8] sm:$0xff] %v806
    %1136 = vst [vmem:[#allocation2 + $0xe0] sm:$0xff] %v810
    %1137 = vst [vmem:[#allocation2 + $0xe8] sm:$0xff] %v812
    %1138 = vst [vmem:[#allocation2 + $0xf0] sm:$0xff] %v816
    %1139 = vst [vmem:[#allocation2 + $0xf8] sm:$0xff] %v818
    %1140 = vst [vmem:[#allocation2 + $0x100] sm:$0xff] %v822
    %1141 = vst [vmem:[#allocation2 + $0x108] sm:$0xff] %v824
    %1142 = vst [vmem:[#allocation2 + $0x110] sm:$0xff] %v828
    %1143 = vst [vmem:[#allocation2 + $0x118] sm:$0xff] %v830
    %1144 = vst [vmem:[#allocation2 + $0x120] sm:$0xff] %v834
    %1145 = vst [vmem:[#allocation2 + $0x128] sm:$0xff] %v836
    %1146 = vst [vmem:[#allocation2 + $0x130] sm:$0xff] %v840
    %1147 = vst [vmem:[#allocation2 + $0x138] sm:$0xff] %v842
    %1148 = vst [vmem:[#allocation2 + $0x140] sm:$0xff] %v846
    %1149 = vst [vmem:[#allocation2 + $0x148] sm:$0xff] %v848
    %1150 = vst [vmem:[#allocation2 + $0x150] sm:$0xff] %v852
    %1151 = vst [vmem:[#allocation2 + $0x158] sm:$0xff] %v854
    %1152 = vst [vmem:[#allocation2 + $0x160] sm:$0xff] %v858
    %1153 = vst [vmem:[#allocation2 + $0x168] sm:$0xff] %v860
    %1154 = vst [vmem:[#allocation2 + $0x170] sm:$0xff] %v864
    %1155 = vst [vmem:[#allocation2 + $0x178] sm:$0xff] %v866
    %1156 = vst [vmem:[#allocation2 + $0x180] sm:$0xff] %v870
    %1157 = vst [vmem:[#allocation2 + $0x188] sm:$0xff] %v872
    %1158 = vst [vmem:[#allocation2 + $0x190] sm:$0xff] %v876
    %1159 = vst [vmem:[#allocation2 + $0x198] sm:$0xff] %v878
    %1160 = vst [vmem:[#allocation2 + $0x1a0] sm:$0xff] %v882
    %1161 = vst [vmem:[#allocation2 + $0x1a8] sm:$0xff] %v884
    %1162 = vst [vmem:[#allocation2 + $0x1b0] sm:$0xff] %v888
    %1163 = vst [vmem:[#allocation2 + $0x1b8] sm:$0xff] %v890
    %1164 = vst [vmem:[#allocation2 + $0x1c0] sm:$0xff] %v894
    %1165 = vst [vmem:[#allocation2 + $0x1c8] sm:$0xff] %v896
    %1166 = vst [vmem:[#allocation2 + $0x1d0] sm:$0xff] %v900
    %1167 = vst [vmem:[#allocation2 + $0x1d8] sm:$0xff] %v902
    %1168 = vst [vmem:[#allocation2 + $0x1e0] sm:$0xff] %v906
    %1169 = vst [vmem:[#allocation2 + $0x1e8] sm:$0xff] %v908
    %1170 = vst [vmem:[#allocation2 + $0x1f0] sm:$0xff] %v912
    %1171 = vst [vmem:[#allocation2 + $0x1f8] sm:$0xff] %v914
    %1172 = vst [vmem:[#allocation2 + $0x200] sm:$0xff] %v918
    %1173 = vst [vmem:[#allocation2 + $0x208] sm:$0xff] %v920
    %1174 = vst [vmem:[#allocation2 + $0x210] sm:$0xff] %v924
    %1175 = vst [vmem:[#allocation2 + $0x218] sm:$0xff] %v926
    %1176 = vst [vmem:[#allocation2 + $0x220] sm:$0xff] %v930
    %1177 = vst [vmem:[#allocation2 + $0x228] sm:$0xff] %v932
    %1178 = vst [vmem:[#allocation2 + $0x230] sm:$0xff] %v936
    %1179 = vst [vmem:[#allocation2 + $0x238] sm:$0xff] %v938
    %1180 = vst [vmem:[#allocation2 + $0x240] sm:$0xff] %v942
    %1181 = vst [vmem:[#allocation2 + $0x248] sm:$0xff] %v944
    %1182 = vst [vmem:[#allocation2 + $0x250] sm:$0xff] %v948
    %1183 = vst [vmem:[#allocation2 + $0x258] sm:$0xff] %v950
    %1184 = vst [vmem:[#allocation2 + $0x260] sm:$0xff] %v954
    %1185 = vst [vmem:[#allocation2 + $0x268] sm:$0xff] %v956
    %1186 = vst [vmem:[#allocation2 + $0x270] sm:$0xff] %v960
    %1187 = vst [vmem:[#allocation2 + $0x278] sm:$0xff] %v962
    %1188 = vst [vmem:[#allocation2 + $0x280] sm:$0xff] %v966
    %1189 = vst [vmem:[#allocation2 + $0x288] sm:$0xff] %v968
    %1190 = vst [vmem:[#allocation2 + $0x290] sm:$0xff] %v972
    %1191 = vst [vmem:[#allocation2 + $0x298] sm:$0xff] %v974
    %1192 = vst [vmem:[#allocation2 + $0x2a0] sm:$0xff] %v978
    %1193 = vst [vmem:[#allocation2 + $0x2a8] sm:$0xff] %v980
    %1194 = vst [vmem:[#allocation2 + $0x2b0] sm:$0xff] %v984
    %1195 = vst [vmem:[#allocation2 + $0x2b8] sm:$0xff] %v986
    %1196 = vst [vmem:[#allocation2 + $0x2c0] sm:$0xff] %v990
    %1197 = vst [vmem:[#allocation2 + $0x2c8] sm:$0xff] %v992
    %1198 = vst [vmem:[#allocation2 + $0x2d0] sm:$0xff] %v996
    %1199 = vst [vmem:[#allocation2 + $0x2d8] sm:$0xff] %v998
    %1200 = vst [vmem:[#allocation2 + $0x2e0] sm:$0xff] %v1002
    %1201 = vst [vmem:[#allocation2 + $0x2e8] sm:$0xff] %v1004
    %1202 = vst [vmem:[#allocation2 + $0x2f0] sm:$0xff] %v1008
    %1203 = vst [vmem:[#allocation2 + $0x2f8] sm:$0xff] %v1010
    %1204 = vst [vmem:[#allocation2 + $0x300] sm:$0xff] %v1014
    %1205 = vst [vmem:[#allocation2 + $0x308] sm:$0xff] %v1016
    %1206 = vst [vmem:[#allocation2 + $0x310] sm:$0xff] %v1020
    %1207 = vst [vmem:[#allocation2 + $0x318] sm:$0xff] %v1022
    %1208 = vst [vmem:[#allocation2 + $0x320] sm:$0xff] %v1026
    %1209 = vst [vmem:[#allocation2 + $0x328] sm:$0xff] %v1028
    %1210 = vst [vmem:[#allocation2 + $0x330] sm:$0xff] %v1032
    %1211 = vst [vmem:[#allocation2 + $0x338] sm:$0xff] %v1034
    %1212 = vst [vmem:[#allocation2 + $0x340] sm:$0xff] %v1038
    %1213 = vst [vmem:[#allocation2 + $0x348] sm:$0xff] %v1040
    %1214 = vst [vmem:[#allocation2 + $0x350] sm:$0xff] %v1044
    %1215 = vst [vmem:[#allocation2 + $0x358] sm:$0xff] %v1046
    %1216 = vst [vmem:[#allocation2 + $0x360] sm:$0xff] %v1050
    %1217 = vst [vmem:[#allocation2 + $0x368] sm:$0xff] %v1052
    %1218 = vst [vmem:[#allocation2 + $0x370] sm:$0xff] %v1056
    %1219 = vst [vmem:[#allocation2 + $0x378] sm:$0xff] %v1058
    %1220 = vst [vmem:[#allocation2 + $0x380] sm:$0xff] %v1062
    %1221 = vst [vmem:[#allocation2 + $0x388] sm:$0xff] %v1064
    %1222 = vst [vmem:[#allocation2 + $0x390] sm:$0xff] %v1068
    %1223 = vst [vmem:[#allocation2 + $0x398] sm:$0xff] %v1070
    %1224 = vst [vmem:[#allocation2 + $0x3a0] sm:$0xff] %v1074
    %1225 = vst [vmem:[#allocation2 + $0x3a8] sm:$0xff] %v1076
    %1226 = vst [vmem:[#allocation2 + $0x3b0] sm:$0xff] %v1080
    %1227 = vst [vmem:[#allocation2 + $0x3b8] sm:$0xff] %v1082
    %1228 = vst [vmem:[#allocation2 + $0x3c0] sm:$0xff] %v1086
    %1229 = vst [vmem:[#allocation2 + $0x3c8] sm:$0xff] %v1088
    %1230 = vst [vmem:[#allocation2 + $0x3d0] sm:$0xff] %v1092
    %1231 = vst [vmem:[#allocation2 + $0x3d8] sm:$0xff] %v1094
    %1232 = vst [vmem:[#allocation2 + $0x3e0] sm:$0xff] %v1098
    %1233 = vst [vmem:[#allocation2 + $0x3e8] sm:$0xff] %v1100
    %1234 = vst [vmem:[#allocation2 + $0x3f0] sm:$0xff] %v1104
    %1235 = vst [vmem:[#allocation2 + $0x3f8] sm:$0xff] %v1106
    // Predicated region
    $region10: #{tpu_custom_call.1} parent=1 // pred_check
      _
    $region11: #{tpu_custom_call.1} parent=1 // pred_check_branch
      %1237 = sbr.rel (0) target = $region13
    $region12: #{tpu_custom_call.1} parent=1 // pred_region
      %s1239 = ssub.s32 16384, 512
      %1240 = vsyncadd [#allocation3], %s1239
      %s1241 = sshll.u32 [#allocation2], 4
      %s1242 = int_to_ptr.vmem [resolvable:$true] %s1241
      %1247 = dma.vmem_to_hbm [thread:$0]  %s1242, 512, %s2, [#allocation3], 256, 256, 16
    $region13: #{tpu_custom_call.1} parent=1 // pred_fallthru
      _
    // Predicated region
    $region14: #{tpu_custom_call.1} parent=1 // pred_check
      _
    $region15: #{tpu_custom_call.1} parent=1 // pred_check_branch
      %1249 = sbr.rel (0) target = $region17
    $region16: #{tpu_custom_call.1} parent=1 // pred_region
      %1250 = dma.done [#allocation3], 16384
    $region17: #{tpu_custom_call.1} parent=1 // pred_fallthru
      _
    %1251 = vsyncpa [#allocation3], 1

</llo_original>
